<compile_context>
chip_gen: v6e
topology: v6e:2x2x1
jax: 0.10.0
libtpu: 0.0.40
codegen_flags: <defaults>
</compile_context>

<pallas_src>
import functools

import jax
import jax.numpy as jnp
from jax.experimental import pallas as pl
from jax.experimental.pallas import tpu as pltpu


def _round_up(n, m):
    return ((n + m - 1) // m) * m


def _pick_tile_b(B, D):
    """Largest batch tile that fits comfortably in scoped VMEM, with >= 2 grid steps
    for large batches so v7x's two TensorCores both get work."""
    # Per-row VMEM bytes: double-buffered f32 x + out streams (D lanes each) plus the
    # live f32 intermediates h1 (128 lanes) and h2 (64 lanes) inside the kernel body.
    bytes_per_row = 2 * 2 * (4 * D) + (128 + 64) * 4
    budget = 12 * 1024 * 1024                      # stays under v5e's 16 MiB default scoped VMEM
    tile = min(4096, max(8, budget // bytes_per_row))
    tile -= tile % 8                               # f32 sublane tile is 8 rows
    if B <= 1024:
        return _round_up(B, 8)                     # small batch: a single sublane-aligned tile
    two_way = _round_up((B + 1) // 2, 8)           # ensure >= 2 grid steps (v7x megacore)
    return max(8, min(tile, two_way))


def mlp_softmax_kernel(x_ref, w1_ref, b1_ref, w2_ref, b2_ref, w3_ref, b3_ref, out_ref):
    # x_ref: (TILE_B, D) f32 ; weights bf16 stored as (in, out) ; biases f32 (1, out)
    x = x_ref[...].astype(jnp.bfloat16)            # in-kernel cast rides a VPU slot (mem-bound)

    # Layer 1: Linear(D -> 128) + ReLU  (bf16 operands, f32 accumulation on the MXU)
    h1 = jnp.dot(x, w1_ref[...], preferred_element_type=jnp.float32)
    h1 = jnp.maximum(h1 + b1_ref[...], 0.0)

    # Layer 2: Linear(128 -> 64) + ReLU
    h2 = jnp.dot(h1.astype(jnp.bfloat16), w2_ref[...], preferred_element_type=jnp.float32)
    h2 = jnp.maximum(h2 + b2_ref[...], 0.0)

    # Layer 3: Linear(64 -> D)
    logits = jnp.dot(h2.astype(jnp.bfloat16), w3_ref[...], preferred_element_type=jnp.float32)
    logits = logits + b3_ref[...]

    # Numerically stable softmax over the last (lane) dim, all in f32.
    m = jnp.max(logits, axis=-1, keepdims=True)
    e = jnp.exp(logits - m)
    denom = jnp.sum(e, axis=-1, keepdims=True)
    out_ref[...] = (e * pl.reciprocal(denom, approx=False)).astype(out_ref.dtype)


@functools.partial(jax.jit, static_argnames=("input_size",))
def torch_model_forward(x, params, *, input_size):
    """x: (B, input_size) float32. params: dict of f32 weights/biases stored as (in, out).

    Returns softmax probabilities, shape (B, input_size), float32.
    """
    w1, b1 = params["w1"], params["b1"]     # (D, 128), (1, 128)
    w2, b2 = params["w2"], params["b2"]     # (128, 64), (1, 64)
    w3, b3 = params["w3"], params["b3"]     # (64, D),  (1, D)

    B, D = x.shape
    assert D == input_size

    TILE_B = _pick_tile_b(B, D)
    B_pad = _round_up(B, TILE_B)

    bf16, f32 = jnp.bfloat16, jnp.float32

    # Only the batch dim is ever padded (feature dims stay at their natural widths —
    # full-extent last dims are exempt from the 128-lane BlockSpec rule).
    x_p = x if B_pad == B else jnp.pad(x, ((0, B_pad - B), (0, 0)))

    # Weights are tiny and VMEM-resident; cast once to bf16 (f32 accumulate in-kernel).
    w1_b, w2_b, w3_b = w1.astype(bf16), w2.astype(bf16), w3.astype(bf16)
    b1_f, b2_f, b3_f = b1.astype(f32), b2.astype(f32), b3.astype(f32)

    resident = lambda shape: pl.BlockSpec(shape, lambda i: (0, 0))  # VMEM-resident params

    grid_spec = pltpu.PrefetchScalarGridSpec(
        num_scalar_prefetch=0,
        grid=(B_pad // TILE_B,),
        in_specs=[
            pl.BlockSpec((TILE_B, D), lambda i: (i, 0)),   # x: streamed over batch
            resident((D, 128)), resident((1, 128)),
            resident((128, 64)), resident((1, 64)),
            resident((64, D)), resident((1, D)),
        ],
        out_specs=pl.BlockSpec((TILE_B, D), lambda i: (i, 0)),
    )

    out = pl.pallas_call(
        mlp_softmax_kernel,
        out_shape=jax.ShapeDtypeStruct((B_pad, D), jnp.float32),
        grid_spec=grid_spec,
        compiler_params=pltpu.CompilerParams(
            dimension_semantics=("parallel",),   # megacore-shards the batch grid on v7x
        ),
    )(x_p, w1_b, b1_f, w2_b, b2_f, w3_b, b3_f)

    # Only padded *batch* rows (if any) are dropped; no feature-dim slice pass.
    return out if B_pad == B else out[:B]


def init_params(input_size, key):
    """Deterministic parameter init (PyTorch-like uniform fan-in scaling).

    Weights are stored transposed vs. PyTorch, i.e. (in_features, out_features),
    so x @ W equals PyTorch's x @ W.T with its layout.
    """
    def linear(key, fan_in, fan_out):
        kw, kb = jax.random.split(key)
        bound = 1.0 / (fan_in ** 0.5)
        w = jax.random.uniform(kw, (fan_in, fan_out), jnp.float32, -bound, bound)
        b = jax.random.uniform(kb, (1, fan_out), jnp.float32, -bound, bound)
        return w, b

    k1, k2, k3 = jax.random.split(key, 3)
    w1, b1 = linear(k1, input_size, 128)
    w2, b2 = linear(k2, 128, 64)
    w3, b3 = linear(k3, 64, input_size)
    return {"w1": w1, "b1": b1, "w2": w2, "b2": b2, "w3": w3, "b3": b3}


def reference_forward_f32(x, params):
    """Pure-f32 reference (matches the PyTorch module's math exactly)."""
    h1 = jnp.maximum(x @ params["w1"] + params["b1"], 0.0)
    h2 = jnp.maximum(h1 @ params["w2"] + params["b2"], 0.0)
    logits = h2 @ params["w3"] + params["b3"]
    return jax.nn.softmax(logits, axis=1)


def reference_forward_bf16(x, params):
    """Reference emulating the kernel's bf16-operand / f32-accumulate matmuls."""
    bf16, f32 = jnp.bfloat16, jnp.float32
    h1 = jnp.dot(x.astype(bf16), params["w1"].astype(bf16), preferred_element_type=f32)
    h1 = jnp.maximum(h1 + params["b1"], 0.0)
    h2 = jnp.dot(h1.astype(bf16), params["w2"].astype(bf16), preferred_element_type=f32)
    h2 = jnp.maximum(h2 + params["b2"], 0.0)
    logits = jnp.dot(h2.astype(bf16), params["w3"].astype(bf16), preferred_element_type=f32)
    logits = logits + params["b3"]
    return jax.nn.softmax(logits, axis=1)


if __name__ == "__main__":
    input_size = 8
    batch = 8

    key = jax.random.PRNGKey(0)
    kx, kp = jax.random.split(key)
    x = jax.random.normal(kx, (batch, input_size), jnp.float32)
    params = init_params(input_size, kp)

    out = torch_model_forward(x, params, input_size=input_size)
    out = jax.block_until_ready(out)

    ref_bf16 = reference_forward_bf16(x, params)
    ref_f32 = reference_forward_f32(x, params)

    assert out.shape == (batch, input_size)
    # tight check vs. a reference using the same bf16-operand math
    assert jnp.allclose(out, ref_bf16, atol=2e-3, rtol=2e-3), "mismatch vs bf16 reference"
    # loose check vs. the exact f32 PyTorch-equivalent math (bf16 operand rounding)
    assert jnp.allclose(out, ref_f32, atol=3e-2, rtol=3e-2), "mismatch vs f32 reference"
    # softmax rows sum to 1 (exact reciprocal -> f32 roundoff only)
    assert jnp.allclose(jnp.sum(out, axis=1), 1.0, atol=1e-4), "softmax rows must sum to 1"

    print("KERNEL_OK")
</pallas_src>

<mosaic_0001>
module attributes {stable_mosaic.version = 11 : i64} {
  func.func @mlp_softmax_kernel(%arg0: i32, %arg1: memref<8x8xf32, #tpu.memory_space<vmem>>, %arg2: memref<8x128xbf16, #tpu.memory_space<vmem>>, %arg3: memref<1x128xf32, #tpu.memory_space<vmem>>, %arg4: memref<128x64xbf16, #tpu.memory_space<vmem>>, %arg5: memref<1x64xf32, #tpu.memory_space<vmem>>, %arg6: memref<64x8xbf16, #tpu.memory_space<vmem>>, %arg7: memref<1x8xf32, #tpu.memory_space<vmem>>, %arg8: memref<8x8xf32, #tpu.memory_space<vmem>>) attributes {dimension_semantics = [#tpu.dimension_semantics<parallel>], iteration_bounds = array<i64: 1>, scalar_prefetch = 0 : i64, scratch_operands = 0 : i64, tpu.core_type = #tpu.core_type<tc>, window_params = [{transform_indices = @transform_0, window_bounds = array<i64: 8, 8>}, {pipeline_mode = #tpu.pipeline_mode<synchronous>, transform_indices = @transform_1, window_bounds = array<i64: 8, 128>}, {pipeline_mode = #tpu.pipeline_mode<synchronous>, transform_indices = @transform_2, window_bounds = array<i64: 1, 128>}, {pipeline_mode = #tpu.pipeline_mode<synchronous>, transform_indices = @transform_3, window_bounds = array<i64: 128, 64>}, {pipeline_mode = #tpu.pipeline_mode<synchronous>, transform_indices = @transform_4, window_bounds = array<i64: 1, 64>}, {pipeline_mode = #tpu.pipeline_mode<synchronous>, transform_indices = @transform_5, window_bounds = array<i64: 64, 8>}, {pipeline_mode = #tpu.pipeline_mode<synchronous>, transform_indices = @transform_6, window_bounds = array<i64: 1, 8>}, {transform_indices = @transform_7, window_bounds = array<i64: 8, 8>}]} {
    %c0 = arith.constant 0 : index
    %c0_0 = arith.constant 0 : index
    %0 = vector.load %arg1[%c0, %c0_0] : memref<8x8xf32, #tpu.memory_space<vmem>>, vector<8x8xf32>
    %1 = arith.truncf %0 : vector<8x8xf32> to vector<8x8xbf16>
    %c0_1 = arith.constant 0 : index
    %c0_2 = arith.constant 0 : index
    %2 = vector.load %arg2[%c0_1, %c0_2] : memref<8x128xbf16, #tpu.memory_space<vmem>>, vector<8x128xbf16>
    %cst = arith.constant dense<0.000000e+00> : vector<8x128xf32>
    %3 = tpu.matmul %1, %2, %cst {dimension_numbers = #tpu.dot_dimension_numbers<[1], [0], [0], [1], [0, 0, 1, 1], [], []>} : vector<8x8xbf16>, vector<8x128xbf16>, vector<8x128xf32> -> vector<8x128xf32>
    %c0_3 = arith.constant 0 : index
    %c0_4 = arith.constant 0 : index
    %4 = vector.load %arg3[%c0_3, %c0_4] : memref<1x128xf32, #tpu.memory_space<vmem>>, vector<1x128xf32>
    %5 = vector.broadcast %4 : vector<1x128xf32> to vector<8x128xf32>
    %6 = arith.addf %3, %5 : vector<8x128xf32>
    %cst_5 = arith.constant 0.000000e+00 : f32
    %7 = vector.broadcast %cst_5 : f32 to vector<8x128xf32>
    %8 = arith.maximumf %6, %7 : vector<8x128xf32>
    %9 = arith.truncf %8 : vector<8x128xf32> to vector<8x128xbf16>
    %c0_6 = arith.constant 0 : index
    %c0_7 = arith.constant 0 : index
    %10 = vector.load %arg4[%c0_6, %c0_7] : memref<128x64xbf16, #tpu.memory_space<vmem>>, vector<128x64xbf16>
    %cst_8 = arith.constant dense<0.000000e+00> : vector<8x64xf32>
    %11 = tpu.matmul %9, %10, %cst_8 {dimension_numbers = #tpu.dot_dimension_numbers<[1], [0], [0], [1], [0, 0, 1, 1], [], []>} : vector<8x128xbf16>, vector<128x64xbf16>, vector<8x64xf32> -> vector<8x64xf32>
    %c0_9 = arith.constant 0 : index
    %c0_10 = arith.constant 0 : index
    %12 = vector.load %arg5[%c0_9, %c0_10] : memref<1x64xf32, #tpu.memory_space<vmem>>, vector<1x64xf32>
    %13 = vector.broadcast %12 : vector<1x64xf32> to vector<8x64xf32>
    %14 = arith.addf %11, %13 : vector<8x64xf32>
    %cst_11 = arith.constant 0.000000e+00 : f32
    %15 = vector.broadcast %cst_11 : f32 to vector<8x64xf32>
    %16 = arith.maximumf %14, %15 : vector<8x64xf32>
    %17 = arith.truncf %16 : vector<8x64xf32> to vector<8x64xbf16>
    %c0_12 = arith.constant 0 : index
    %c0_13 = arith.constant 0 : index
    %18 = vector.load %arg6[%c0_12, %c0_13] : memref<64x8xbf16, #tpu.memory_space<vmem>>, vector<64x8xbf16>
    %cst_14 = arith.constant dense<0.000000e+00> : vector<8x8xf32>
    %19 = tpu.matmul %17, %18, %cst_14 {dimension_numbers = #tpu.dot_dimension_numbers<[1], [0], [0], [1], [0, 0, 1, 1], [], []>} : vector<8x64xbf16>, vector<64x8xbf16>, vector<8x8xf32> -> vector<8x8xf32>
    %c0_15 = arith.constant 0 : index
    %c0_16 = arith.constant 0 : index
    %20 = vector.load %arg7[%c0_15, %c0_16] : memref<1x8xf32, #tpu.memory_space<vmem>>, vector<1x8xf32>
    %21 = vector.broadcast %20 : vector<1x8xf32> to vector<8x8xf32>
    %22 = arith.addf %19, %21 : vector<8x8xf32>
    %cst_17 = arith.constant dense<0xFF800000> : vector<8xf32>
    %23 = vector.multi_reduction <maximumf>, %22, %cst_17 [1] : vector<8x8xf32> to vector<8xf32>
    %24 = vector.shape_cast %23 : vector<8xf32> to vector<8x1xf32>
    %25 = vector.broadcast %24 : vector<8x1xf32> to vector<8x8xf32>
    %26 = arith.subf %22, %25 : vector<8x8xf32>
    %27 = math.exp %26 : vector<8x8xf32>
    %cst_18 = arith.constant dense<0.000000e+00> : vector<8xf32>
    %28 = vector.multi_reduction <add>, %27, %cst_18 [1] : vector<8x8xf32> to vector<8xf32>
    %29 = vector.shape_cast %28 : vector<8xf32> to vector<8x1xf32>
    %30 = tpu.reciprocal %29 : vector<8x1xf32> -> vector<8x1xf32>
    %31 = vector.broadcast %30 : vector<8x1xf32> to vector<8x8xf32>
    %32 = arith.mulf %27, %31 : vector<8x8xf32>
    %c0_19 = arith.constant 0 : index
    %c0_20 = arith.constant 0 : index
    %33 = vector.load %arg8[%c0_19, %c0_20] : memref<8x8xf32, #tpu.memory_space<vmem>>, vector<8x8xf32>
    tpu.vector_store %arg8[%c0_19, %c0_20], %32 {strides = array<i32>} : memref<8x8xf32, #tpu.memory_space<vmem>>, vector<8x8xf32>,
    return
  }
  func.func @transform_0(%arg0: i32) -> (i32, i32) {
    %c0_i32 = arith.constant 0 : i32
    %c0_i32_0 = arith.constant 0 : i32
    return %arg0, %c0_i32 : i32, i32
  }
  func.func @transform_1(%arg0: i32) -> (i32, i32) {
    %c0_i32 = arith.constant 0 : i32
    %c0_i32_0 = arith.constant 0 : i32
    %c0_i32_1 = arith.constant 0 : i32
    return %c0_i32, %c0_i32_0 : i32, i32
  }
  func.func @transform_2(%arg0: i32) -> (i32, i32) {
    %c0_i32 = arith.constant 0 : i32
    %c0_i32_0 = arith.constant 0 : i32
    %c0_i32_1 = arith.constant 0 : i32
    return %c0_i32, %c0_i32_0 : i32, i32
  }
  func.func @transform_3(%arg0: i32) -> (i32, i32) {
    %c0_i32 = arith.constant 0 : i32
    %c0_i32_0 = arith.constant 0 : i32
    %c0_i32_1 = arith.constant 0 : i32
    return %c0_i32, %c0_i32_0 : i32, i32
  }
  func.func @transform_4(%arg0: i32) -> (i32, i32) {
    %c0_i32 = arith.constant 0 : i32
    %c0_i32_0 = arith.constant 0 : i32
    %c0_i32_1 = arith.constant 0 : i32
    return %c0_i32, %c0_i32_0 : i32, i32
  }
  func.func @transform_5(%arg0: i32) -> (i32, i32) {
    %c0_i32 = arith.constant 0 : i32
    %c0_i32_0 = arith.constant 0 : i32
    %c0_i32_1 = arith.constant 0 : i32
    return %c0_i32, %c0_i32_0 : i32, i32
  }
  func.func @transform_6(%arg0: i32) -> (i32, i32) {
    %c0_i32 = arith.constant 0 : i32
    %c0_i32_0 = arith.constant 0 : i32
    %c0_i32_1 = arith.constant 0 : i32
    return %c0_i32, %c0_i32_0 : i32, i32
  }
  func.func @transform_7(%arg0: i32) -> (i32, i32) {
    %c0_i32 = arith.constant 0 : i32
    %c0_i32_0 = arith.constant 0 : i32
    return %arg0, %c0_i32 : i32, i32
  }
}

</mosaic_0001>

<llo_original>
// kernel: torch_model_forward.1
$region0: #{torch_model_forward.1}
  #allocation0 [shape = 'u32[]', space=smem, size = 0x4, offset = 0x4, fixed_abs, tag = 'smem constant byte address 0x4 - core index']
  #allocation1 [shape = 'u32[144,128]{1,0:T(1,128)}', space=vmem, size = 0x12000, scoped, tag = 'internal scratch']
  %s0 = inlined_call_operand.vmem [shape: f32[8,8], index: 0, kind: input, shape index: {}]
  %s1 = inlined_call_operand.vmem [shape: bf16[8,128], index: 1, kind: input, shape index: {}]
  %s2 = inlined_call_operand.vmem [shape: f32[1,128], index: 2, kind: input, shape index: {}]
  %s3 = inlined_call_operand.vmem [shape: bf16[128,64], index: 3, kind: input, shape index: {}]
  %s4 = inlined_call_operand.vmem [shape: f32[1,64], index: 4, kind: input, shape index: {}]
  %s5 = inlined_call_operand.vmem [shape: bf16[64,8], index: 5, kind: input, shape index: {}]
  %s6 = inlined_call_operand.vmem [shape: f32[1,8], index: 6, kind: input, shape index: {}]
  %s7 = inlined_call_operand.hbm [shape: f32[8,8], index: 7, kind: output, shape index: {}]
  %s8 = sld [smem:[#allocation0]]
  $region38: #{torch_model_forward.1} parent=0
    _
  %s10 = ssub.s32 1, %s8
  %s11 = scalar_select 0, %s10, %s8
  $region1: #{torch_model_forward.1} parent=0
    #allocation2 [shape = 'u8[4096]{0}', space=vmem, size = 0x1000, scoped, tag = 'output window, operand 0, single buffered']
    #allocation3 [shape = 's32[1]{0}', space=sflag, size = 0x4, scoped, tag = 'scoped memory for torch_model_forward.1']
    %12 = vsyncpa [#allocation3], 0
    // Predicated region
    $region2: #{torch_model_forward.1} parent=1 // pred_check
      _
    $region3: #{torch_model_forward.1} parent=1 // pred_check_branch
      %14 = sbr.rel (0) target = $region5
    $region4: #{torch_model_forward.1} parent=1 // pred_region
      _
    $region5: #{torch_model_forward.1} parent=1 // pred_fallthru
      _
    // Predicated region
    $region6: #{torch_model_forward.1} parent=1 // pred_check
      _
    $region7: #{torch_model_forward.1} parent=1 // pred_check_branch
      %16 = sbr.rel (0) target = $region9
    $region8: #{torch_model_forward.1} parent=1 // pred_region
      _
    $region9: #{torch_model_forward.1} parent=1 // pred_fallthru
      _
    // Predicated region
    $region10: #{torch_model_forward.1} parent=1 // pred_check
      _
    $region11: #{torch_model_forward.1} parent=1 // pred_check_branch
      %18 = sbr.rel (0) target = $region13
    $region12: #{torch_model_forward.1} parent=1 // pred_region
      _
    $region13: #{torch_model_forward.1} parent=1 // pred_fallthru
      _
    // Predicated region
    $region14: #{torch_model_forward.1} parent=1 // pred_check
      _
    $region15: #{torch_model_forward.1} parent=1 // pred_check_branch
      %20 = sbr.rel (0) target = $region17
    $region16: #{torch_model_forward.1} parent=1 // pred_region
      _
    $region17: #{torch_model_forward.1} parent=1 // pred_fallthru
      _
    // Predicated region
    $region18: #{torch_model_forward.1} parent=1 // pred_check
      _
    $region19: #{torch_model_forward.1} parent=1 // pred_check_branch
      %22 = sbr.rel (0) target = $region21
    $region20: #{torch_model_forward.1} parent=1 // pred_region
      _
    $region21: #{torch_model_forward.1} parent=1 // pred_fallthru
      _
    // Predicated region
    $region22: #{torch_model_forward.1} parent=1 // pred_check
      _
    $region23: #{torch_model_forward.1} parent=1 // pred_check_branch
      %24 = sbr.rel (0) target = $region25
    $region24: #{torch_model_forward.1} parent=1 // pred_region
      _
    $region25: #{torch_model_forward.1} parent=1 // pred_fallthru
      _
    // Predicated region
    $region26: #{torch_model_forward.1} parent=1 // pred_check
      _
    $region27: #{torch_model_forward.1} parent=1 // pred_check_branch
      %26 = sbr.rel (0) target = $region29
    $region28: #{torch_model_forward.1} parent=1 // pred_region
      _
    $region29: #{torch_model_forward.1} parent=1 // pred_fallthru
      _
    %v28 = vld [vmem:[%s0] sm:$0xff]
    %v29 = vpack.c.bf16 %v28, %v28
    %v30 = vld [vmem:[%s1] sm:$0xf]
    %v31 = vld [vmem:[%s2] sm:$0x1]
    %v33 = vlaneseq
    %v34 = vshrl.u32 %v33, 7
    %v35 = vsub.s32 0, %v34
    %v36 = vrot.slane %v31, %v35
    %vm38 = vcmask 64512
    %v40 = vsel %vm38, %v29, 0
    %vm42 = vcmask 1043456
    %v44 = vsel %vm42, %v30, 0
    %46 = vmatprep.subr.bf16.mxu0 0
    %47 = vmatpush1.bf16.msra.mxu0 0
    %48 = vmatprep.subr.bf16.mxu0 0
    %49 = vmatpush1.bf16.msra.mxu0 0
    %50 = vmatprep.subr.bf16.mxu0 0
    %51 = vmatpush1.bf16.msra.mxu0 0
    %52 = vmatprep.subr.bf16.mxu0 0
    %53 = vmatpush1.bf16.msra.mxu0 0
    %54 = vmatprep.subr.bf16.mxu0 0
    %55 = vmatpush1.bf16.msra.mxu0 0
    %56 = vmatprep.subr.bf16.mxu0 0
    %57 = vmatpush1.bf16.msra.mxu0 0
    %58 = vmatprep.subr.bf16.mxu0 0
    %59 = vmatpush1.bf16.msra.mxu0 0
    %60 = vmatprep.subr.bf16.mxu0 0
    %61 = vmatpush1.bf16.msra.mxu0 %v44
    %62 = vmatprep.subr.bf16.mxu0 0
    %63 = vmatpush2.bf16.msra.mxu0 0
    %64 = vmatprep.subr.bf16.mxu0 0
    %65 = vmatpush2.bf16.msra.mxu0 0
    %66 = vmatprep.subr.bf16.mxu0 0
    %67 = vmatpush2.bf16.msra.mxu0 0
    %68 = vmatprep.subr.bf16.mxu0 0
    %69 = vmatpush2.bf16.msra.mxu0 0
    %70 = vmatprep.subr.bf16.mxu0 0
    %71 = vmatpush2.bf16.msra.mxu0 0
    %72 = vmatprep.subr.bf16.mxu0 0
    %73 = vmatpush2.bf16.msra.mxu0 0
    %74 = vmatprep.subr.bf16.mxu0 0
    %75 = vmatpush2.bf16.msra.mxu0 0
    %76 = vmatprep.subr.bf16.mxu0 0
    %77 = vmatpush2.bf16.msra.mxu0 0
    %78 = vmatprep.mubr.bf16.mxu0 0
    %79 = vmatmul.mubr.bf16.gmra.mxu0 %v40
    %v80 = vpop.f32.mrf.mxu0
    %v81 = vadd.f32 %v36, %v80
    %v82 = vpop.f32.mrf.mxu0
    %v83 = vpop.f32.mrf.mxu0
    %v84 = vpop.f32.mrf.mxu0
    %85 = vdwg.mxu0
    %v86 = vmax.f32 %v81, 0.0
    %v87 = vpack.c.bf16 %v86, %v86
    %v88 = vld [vmem:[%s3] sm:$0xf]
    %v89 = vld [vmem:[%s3 + $0x4] sm:$0xf]
    %v90 = vld [vmem:[%s3 + $0x8] sm:$0xf]
    %v91 = vld [vmem:[%s3 + $0xc] sm:$0xf]
    %v92 = vld [vmem:[%s3 + $0x10] sm:$0xf]
    %v93 = vld [vmem:[%s3 + $0x14] sm:$0xf]
    %v94 = vld [vmem:[%s3 + $0x18] sm:$0xf]
    %v95 = vld [vmem:[%s3 + $0x1c] sm:$0xf]
    %v96 = vld [vmem:[%s3 + $0x20] sm:$0xf]
    %v97 = vld [vmem:[%s3 + $0x24] sm:$0xf]
    %v98 = vld [vmem:[%s3 + $0x28] sm:$0xf]
    %v99 = vld [vmem:[%s3 + $0x2c] sm:$0xf]
    %v100 = vld [vmem:[%s3 + $0x30] sm:$0xf]
    %v101 = vld [vmem:[%s3 + $0x34] sm:$0xf]
    %v102 = vld [vmem:[%s3 + $0x38] sm:$0xf]
    %v103 = vld [vmem:[%s3 + $0x3c] sm:$0xf]
    %v104 = vld [vmem:[%s4] sm:$0x1]
    %v106 = vlaneseq
    %v107 = vshrl.u32 %v106, 7
    %v108 = vsub.s32 0, %v107
    %v109 = vrot.slane %v104, %v108
    %v127 = vunpack.c.l.b16 %v88
    %v128 = vunpack.c.l.b16 %v89
    %v129 = vunpack.c.l.b16 %v90
    %v130 = vunpack.c.l.b16 %v91
    %v131 = vunpack.c.l.b16 %v92
    %v132 = vunpack.c.l.b16 %v93
    %v133 = vunpack.c.l.b16 %v94
    %v134 = vunpack.c.l.b16 %v95
    %v135 = vunpack.c.l.b16 %v96
    %v136 = vunpack.c.l.b16 %v97
    %v137 = vunpack.c.l.b16 %v98
    %v138 = vunpack.c.l.b16 %v99
    %v139 = vunpack.c.l.b16 %v100
    %v140 = vunpack.c.l.b16 %v101
    %v141 = vunpack.c.l.b16 %v102
    %v142 = vunpack.c.l.b16 %v103
    %v143 = vpack.c.b16 %v128, %v127
    %v144 = vpack.c.b16 %v130, %v129
    %v145 = vpack.c.b16 %v132, %v131
    %v146 = vpack.c.b16 %v134, %v133
    %v147 = vpack.c.b16 %v136, %v135
    %v148 = vpack.c.b16 %v138, %v137
    %v149 = vpack.c.b16 %v140, %v139
    %v150 = vpack.c.b16 %v142, %v141
    %159 = vmatprep.subr.bf16.mxu0 0
    %160 = vmatpush1.bf16.msra.mxu0 %v150
    %161 = vmatprep.subr.bf16.mxu0 0
    %162 = vmatpush1.bf16.msra.mxu0 %v149
    %163 = vmatprep.subr.bf16.mxu0 0
    %164 = vmatpush1.bf16.msra.mxu0 %v148
    %165 = vmatprep.subr.bf16.mxu0 0
    %166 = vmatpush1.bf16.msra.mxu0 %v147
    %167 = vmatprep.subr.bf16.mxu0 0
    %168 = vmatpush1.bf16.msra.mxu0 %v146
    %169 = vmatprep.subr.bf16.mxu0 0
    %170 = vmatpush1.bf16.msra.mxu0 %v145
    %171 = vmatprep.subr.bf16.mxu0 0
    %172 = vmatpush1.bf16.msra.mxu0 %v144
    %173 = vmatprep.subr.bf16.mxu0 0
    %174 = vmatpush1.bf16.msra.mxu0 %v143
    %175 = vmatprep.subr.bf16.mxu0 0
    %176 = vmatpush2.bf16.msra.mxu0 0
    %177 = vmatprep.subr.bf16.mxu0 0
    %178 = vmatpush2.bf16.msra.mxu0 0
    %179 = vmatprep.subr.bf16.mxu0 0
    %180 = vmatpush2.bf16.msra.mxu0 0
    %181 = vmatprep.subr.bf16.mxu0 0
    %182 = vmatpush2.bf16.msra.mxu0 0
    %183 = vmatprep.subr.bf16.mxu0 0
    %184 = vmatpush2.bf16.msra.mxu0 0
    %185 = vmatprep.subr.bf16.mxu0 0
    %186 = vmatpush2.bf16.msra.mxu0 0
    %187 = vmatprep.subr.bf16.mxu0 0
    %188 = vmatpush2.bf16.msra.mxu0 0
    %189 = vmatprep.subr.bf16.mxu0 0
    %190 = vmatpush2.bf16.msra.mxu0 0
    %191 = vmatprep.mubr.bf16.mxu0 0
    %192 = vmatmul.mubr.bf16.gmra.mxu0 %v87
    %v193 = vpop.f32.mrf.mxu0
    %v194 = vadd.f32 %v109, %v193
    %v195 = vpop.f32.mrf.mxu0
    %v196 = vpop.f32.mrf.mxu0
    %v197 = vpop.f32.mrf.mxu0
    %198 = vdwg.mxu0
    %v199 = vmax.f32 %v194, 0.0
    %v200 = vpack.c.bf16 %v199, %v199
    %v201 = vld [vmem:[%s5] sm:$0xf]
    %v202 = vld [vmem:[%s5 + $0x4] sm:$0xf]
    %v203 = vld [vmem:[%s5 + $0x8] sm:$0xf]
    %v204 = vld [vmem:[%s5 + $0xc] sm:$0xf]
    %v205 = vld [vmem:[%s5 + $0x10] sm:$0xf]
    %v206 = vld [vmem:[%s5 + $0x14] sm:$0xf]
    %v207 = vld [vmem:[%s5 + $0x18] sm:$0xf]
    %v208 = vld [vmem:[%s5 + $0x1c] sm:$0xf]
    %v209 = vld [vmem:[%s6] sm:$0x1]
    %v211 = vlaneseq
    %v212 = vshrl.u32 %v211, 7
    %v213 = vsub.s32 0, %v212
    %v214 = vrot.slane %v209, %v213
    %v224 = vunpack.c.l.b16 %v201
    %v225 = vunpack.c.l.b16 %v202
    %v226 = vunpack.c.l.b16 %v203
    %v227 = vunpack.c.l.b16 %v204
    %v228 = vunpack.c.l.b16 %v205
    %v229 = vunpack.c.l.b16 %v206
    %v230 = vunpack.c.l.b16 %v207
    %v231 = vunpack.c.l.b16 %v208
    %v232 = vpack.c.b16 %v225, %v224
    %v233 = vpack.c.b16 %v227, %v226
    %v234 = vpack.c.b16 %v229, %v228
    %v235 = vpack.c.b16 %v231, %v230
    %vm240 = vcmask 523264
    %v242 = vsel %vm240, %v200, 0
    %244 = vmatprep.subr.bf16.mxu0 0
    %245 = vmatpush1.bf16.msra.mxu0 0
    %246 = vmatprep.subr.bf16.mxu0 0
    %247 = vmatpush1.bf16.msra.mxu0 0
    %248 = vmatprep.subr.bf16.mxu0 0
    %249 = vmatpush1.bf16.msra.mxu0 0
    %250 = vmatprep.subr.bf16.mxu0 0
    %251 = vmatpush1.bf16.msra.mxu0 0
    %252 = vmatprep.subr.bf16.mxu0 0
    %253 = vmatpush1.bf16.msra.mxu0 %v235
    %254 = vmatprep.subr.bf16.mxu0 0
    %255 = vmatpush1.bf16.msra.mxu0 %v234
    %256 = vmatprep.subr.bf16.mxu0 0
    %257 = vmatpush1.bf16.msra.mxu0 %v233
    %258 = vmatprep.subr.bf16.mxu0 0
    %259 = vmatpush1.bf16.msra.mxu0 %v232
    %260 = vmatprep.subr.bf16.mxu0 0
    %261 = vmatpush2.bf16.msra.mxu0 0
    %262 = vmatprep.subr.bf16.mxu0 0
    %263 = vmatpush2.bf16.msra.mxu0 0
    %264 = vmatprep.subr.bf16.mxu0 0
    %265 = vmatpush2.bf16.msra.mxu0 0
    %266 = vmatprep.subr.bf16.mxu0 0
    %267 = vmatpush2.bf16.msra.mxu0 0
    %268 = vmatprep.subr.bf16.mxu0 0
    %269 = vmatpush2.bf16.msra.mxu0 0
    %270 = vmatprep.subr.bf16.mxu0 0
    %271 = vmatpush2.bf16.msra.mxu0 0
    %272 = vmatprep.subr.bf16.mxu0 0
    %273 = vmatpush2.bf16.msra.mxu0 0
    %274 = vmatprep.subr.bf16.mxu0 0
    %275 = vmatpush2.bf16.msra.mxu0 0
    %276 = vmatprep.mubr.bf16.mxu0 0
    %277 = vmatmul.mubr.bf16.gmra.mxu0 %v242
    %v278 = vpop.f32.mrf.mxu0
    %v279 = vadd.f32 %v214, %v278
    %v280 = vpop.f32.mrf.mxu0
    %v281 = vpop.f32.mrf.mxu0
    %v282 = vpop.f32.mrf.mxu0
    %283 = vdwg.mxu0
    %v284 = vsel %vm38, %v279, -inf
    %285 = vmax.xlane.f32.xlu0 %v284
    %v286 = vpop.xlane.xlu0 %285
    %v287 = vsub.f32 %v279, %v286
    %v288 = vmul.f32 %v287, 1.442695
    %v289 = vpow.pop %v288
    %v290 = vsel %vm38, %v289, 0.0
    %291 = vadd.xlane.f32.xlu0 %v290
    %v292 = vpop.xlane.xlu0 %291
    %v293 = vrcp.pop %v292
    %v294 = vmul.f32 %v289, %v293
    %295 = vst.msk [vmem:[#allocation2] sm:$0xff] %vm38, %v294
    // Predicated region
    $region30: #{torch_model_forward.1} parent=1 // pred_check
      _
    $region31: #{torch_model_forward.1} parent=1 // pred_check_branch
      %297 = sbr.rel (0) target = $region33
    $region32: #{torch_model_forward.1} parent=1 // pred_region
      %s299 = ssub.s32 128, 128
      %300 = vsyncadd [#allocation3], %s299
      %s302 = sshll.u32 [#allocation2], 4
      %s303 = int_to_ptr.vmem [resolvable:$true] %s302
      %305 = dma.vmem_to_hbm [thread:$0]  %s303, 128, %s7, [#allocation3]
    $region33: #{torch_model_forward.1} parent=1 // pred_fallthru
      _
    // Predicated region
    $region34: #{torch_model_forward.1} parent=1 // pred_check
      _
    $region35: #{torch_model_forward.1} parent=1 // pred_check_branch
      %307 = sbr.rel (0) target = $region37
    $region36: #{torch_model_forward.1} parent=1 // pred_region
      %308 = dma.done [#allocation3], 128
    $region37: #{torch_model_forward.1} parent=1 // pred_fallthru
      _
    %309 = vsyncpa [#allocation3], 1

</llo_original>
